<compile_context>
chip_gen: v6e
topology: v6e:2x2x1
jax: 0.10.0
libtpu: 0.0.40
codegen_flags: <defaults>
</compile_context>

<pallas_src>
import jax
import jax.numpy as jnp
from jax.experimental import pallas as pl
from jax.experimental.pallas import tpu as pltpu


def _round_up(x, n):
    return ((x + n - 1) // n) * n


def _mlp_kernel(x_ref,
                w1_ref, b1_ref,
                w2_ref, b2_ref,
                w3_ref, b3_ref,
                w4_ref, b4_ref,
                o_ref):
    bf16 = jnp.bfloat16
    f32 = jnp.float32

    x = x_ref[...]                                                    # f32 [tile_b, d]

    # Hidden layers: bf16 MXU matmuls, f32 accumulation, f32 ReLU (VPU).
    h = jnp.dot(x.astype(bf16), w1_ref[...], preferred_element_type=f32) + b1_ref[...]
    h = jnp.maximum(h, 0.0)

    h = jnp.dot(h.astype(bf16), w2_ref[...], preferred_element_type=f32) + b2_ref[...]
    h = jnp.maximum(h, 0.0)

    h = jnp.dot(h.astype(bf16), w3_ref[...], preferred_element_type=f32) + b3_ref[...]
    h = jnp.maximum(h, 0.0)

    z = jnp.dot(h.astype(bf16), w4_ref[...], preferred_element_type=f32) + b4_ref[...]

    # sigmoid(z) = 1 / (1 + exp(-z)).  Clamp z so exp(-z) stays finite and the
    # approximate (EUP) reciprocal never sees +inf; exp + vrcp both run on the
    # EUP slot instead of a VPU f32 divide.
    z = jnp.clip(z, -30.0, 30.0)
    sig = pl.reciprocal(1.0 + jnp.exp(-z), approx=True)
    o_ref[...] = sig.astype(o_ref.dtype)                              # bf16 lane-dense store


def _choose_tile_b(batch):
    bp = _round_up(batch, 8)
    tile = min(bp, 4096)                   # big tiles: per-step overhead amortizes
    min_steps = 4                          # >= 2 pipeline steps per v7x TensorCore
    if bp >= min_steps * 8 and bp // tile < min_steps:
        tile = _round_up((bp + min_steps - 1) // min_steps, 8)
    return max(8, tile)


def neurat_net_forward(x, prep_params, out_dim, *, tile_b=None, return_padded=False):
    """Fused MLP forward.

    x:             [B, d] float32.
    prep_params:   dict from prepare_params() -- lane-padded bf16 weights [in, out]
                   and f32 biases [1, out].
    out_dim:       logical output width m (<= padded width of w4).
    return_padded: if True, return the raw padded bf16 [b_pad, 128] kernel output
                   (skips the extra slice pass over HBM).
    """
    B, d = x.shape
    n_out = prep_params["w4"].shape[1]     # padded output width (multiple of 128)
    assert prep_params["w1"].shape[0] == d

    if tile_b is None:
        tile_b = _choose_tile_b(B)
    tile_b = max(8, _round_up(min(tile_b, _round_up(B, 8)), 8))

    b_pad = _round_up(B, tile_b)
    if b_pad != B:
        # Padded rows are explicit zeros -> no NaN/Inf flows through exp/sigmoid.
        x = jnp.pad(x, ((0, b_pad - B), (0, 0)))

    grid = (b_pad // tile_b,)

    def rep(i):                            # parameters: same block every grid step
        return (0, 0)

    in_specs = [pl.BlockSpec((tile_b, d), lambda i: (i, 0))]
    for idx in range(1, 5):
        in_specs.append(pl.BlockSpec(prep_params[f"w{idx}"].shape, rep))
        in_specs.append(pl.BlockSpec(prep_params[f"b{idx}"].shape, rep))
    out_spec = pl.BlockSpec((tile_b, n_out), lambda i: (i, 0))

    # VMEM budget from the actual buffers: double-buffered x/out tiles,
    # (double-buffered) params, ~two live f32 activation temps, + headroom.
    # Clamp at 48 MiB so it stays within v7x's 64 MiB physical VMEM.
    param_bytes = sum(int(p.size) * p.dtype.itemsize for p in prep_params.values())
    max_feat = max(n_out, max(prep_params[f"w{i}"].shape[1] for i in range(1, 5)))
    x_tile_bytes = tile_b * d * 4
    out_tile_bytes = tile_b * n_out * 2          # bf16 output tile
    act_bytes = 2 * tile_b * max_feat * 4        # two live f32 activations
    need = 2 * (x_tile_bytes + out_tile_bytes) + 2 * param_bytes + act_bytes + (4 << 20)
    vmem_limit = int(min(max(need, 16 << 20), 48 << 20))

    out = pl.pallas_call(
        _mlp_kernel,
        out_shape=jax.ShapeDtypeStruct((b_pad, n_out), jnp.bfloat16),
        grid_spec=pltpu.PrefetchScalarGridSpec(
            num_scalar_prefetch=0,
            grid=grid,
            in_specs=in_specs,
            out_specs=out_spec,
        ),
        compiler_params=pltpu.CompilerParams(
            dimension_semantics=("parallel",),
            vmem_limit_bytes=vmem_limit,
        ),
    )(x,
      prep_params["w1"], prep_params["b1"],
      prep_params["w2"], prep_params["b2"],
      prep_params["w3"], prep_params["b3"],
      prep_params["w4"], prep_params["b4"])

    if return_padded:
        return out                          # padded bf16 [b_pad, n_out], no extra HBM pass
    # Slice+cast fuse into a single pass over the (half-size, bf16) padded output.
    return out[:B, :out_dim].astype(jnp.float32)


def init_params(key, d, h1, h2, h3, m):
    """Deterministic PyTorch-like nn.Linear init; weights stored as [in, out] float32."""
    dims = [(d, h1), (h1, h2), (h2, h3), (h3, m)]
    params = {}
    for idx, (fan_in, fan_out) in enumerate(dims, start=1):
        key, kw, kb = jax.random.split(key, 3)
        bound = 1.0 / jnp.sqrt(jnp.float32(fan_in))
        # PyTorch Linear weight is [out, in]; sample then transpose to [in, out].
        w = jax.random.uniform(kw, (fan_out, fan_in), jnp.float32, -bound, bound).T
        b = jax.random.uniform(kb, (1, fan_out), jnp.float32, -bound, bound)
        params[f"w{idx}"] = w
        params[f"b{idx}"] = b
    return params


def prepare_params(params):
    """One-time lane-dense padding (feature dims -> multiples of 128) + bf16 weights.

    Zero padding is exact: padded hidden columns stay 0 through ReLU and the
    matching padded weight rows of the next layer are 0, so they never
    contribute; padded output columns are sliced off in the wrapper.
    """
    prep = {}
    prev_out_pad = params["w1"].shape[0]   # input dim d is left unpadded
    for idx in range(1, 5):
        w = params[f"w{idx}"]              # [in, out] f32
        b = params[f"b{idx}"]              # [1, out]  f32
        in_dim, out_dim = w.shape
        out_pad = _round_up(out_dim, 128)
        w_p = jnp.zeros((prev_out_pad, out_pad), jnp.float32).at[:in_dim, :out_dim].set(w)
        b_p = jnp.zeros((1, out_pad), jnp.float32).at[:, :out_dim].set(b)
        prep[f"w{idx}"] = w_p.astype(jnp.bfloat16)   # halves param DMA; MXU-native bf16
        prep[f"b{idx}"] = b_p                        # bias stays f32 (added to f32 accumulator)
        prev_out_pad = out_pad
    return prep


def reference_forward_f32(x, params):
    """Original NeuratNet semantics in plain f32 JAX."""
    h = jnp.maximum(x @ params["w1"] + params["b1"], 0.0)
    h = jnp.maximum(h @ params["w2"] + params["b2"], 0.0)
    h = jnp.maximum(h @ params["w3"] + params["b3"], 0.0)
    return jax.nn.sigmoid(h @ params["w4"] + params["b4"])


def reference_forward_prepared(x, prep_params, out_dim):
    """Same bf16 params / f32-accumulation math as the kernel, exact sigmoid."""
    bf16, f32 = jnp.bfloat16, jnp.float32
    h = x
    for idx in (1, 2, 3):
        z = jnp.dot(h.astype(bf16), prep_params[f"w{idx}"], preferred_element_type=f32)
        h = jnp.maximum(z + prep_params[f"b{idx}"], 0.0)
    z = jnp.dot(h.astype(bf16), prep_params["w4"], preferred_element_type=f32) + prep_params["b4"]
    return jax.nn.sigmoid(z)[:, :out_dim]


if __name__ == "__main__":
    # Small shapes consistent with the module: x is [batch, d].
    d, h1, h2, h3, m = 32, 64, 64, 32, 16

    key = jax.random.PRNGKey(0)
    key, kp = jax.random.split(key)
    params = init_params(kp, d, h1, h2, h3, m)
    prep = prepare_params(params)

    # Small case (matches original demo) + a larger batch that exercises a
    # multi-step, pipelined, megacore-shardable grid (tile_b=256 -> grid=(4,)).
    for batch in (8, 1024):
        key, kx = jax.random.split(key)
        x = jax.random.normal(kx, (batch, d), jnp.float32)

        out = jax.block_until_ready(neurat_net_forward(x, prep, m))
        assert out.shape == (batch, m)
        assert bool(jnp.all(jnp.isfinite(out)))

        ref_same = reference_forward_prepared(x, prep, m)   # same bf16 params, exact sigmoid
        ref_f32 = reference_forward_f32(x, params)          # original f32 semantics
        # Tolerances: approx EUP reciprocal (~1e-3) + bf16 output rounding
        # (~2e-3 near 1) vs the bf16-param reference; bf16 parameter rounding
        # on top of that vs the pure-f32 reference.
        assert jnp.allclose(out, ref_same, atol=8e-3), "mismatch vs bf16 reference"
        assert jnp.allclose(out, ref_f32, atol=2.5e-2), "mismatch vs f32 reference"

        # Padded-layout path (no wrapper slice pass) must agree where defined.
        out_pad = jax.block_until_ready(
            neurat_net_forward(x, prep, m, return_padded=True))
        assert jnp.allclose(out_pad[:batch, :m].astype(jnp.float32), out, atol=1e-6)

    print("KERNEL_OK")
</pallas_src>

<mosaic_0001>
module attributes {stable_mosaic.version = 11 : i64} {
  func.func @_mlp_kernel(%arg0: i32, %arg1: memref<8x32xf32, #tpu.memory_space<vmem>>, %arg2: memref<32x128xbf16, #tpu.memory_space<vmem>>, %arg3: memref<1x128xf32, #tpu.memory_space<vmem>>, %arg4: memref<128x128xbf16, #tpu.memory_space<vmem>>, %arg5: memref<1x128xf32, #tpu.memory_space<vmem>>, %arg6: memref<128x128xbf16, #tpu.memory_space<vmem>>, %arg7: memref<1x128xf32, #tpu.memory_space<vmem>>, %arg8: memref<128x128xbf16, #tpu.memory_space<vmem>>, %arg9: memref<1x128xf32, #tpu.memory_space<vmem>>, %arg10: memref<8x128xbf16, #tpu.memory_space<vmem>>) attributes {dimension_semantics = [#tpu.dimension_semantics<parallel>], iteration_bounds = array<i64: 1>, scalar_prefetch = 0 : i64, scratch_operands = 0 : i64, tpu.core_type = #tpu.core_type<tc>, window_params = [{transform_indices = @transform_0, window_bounds = array<i64: 8, 32>}, {pipeline_mode = #tpu.pipeline_mode<synchronous>, transform_indices = @transform_1, window_bounds = array<i64: 32, 128>}, {pipeline_mode = #tpu.pipeline_mode<synchronous>, transform_indices = @transform_2, window_bounds = array<i64: 1, 128>}, {pipeline_mode = #tpu.pipeline_mode<synchronous>, transform_indices = @transform_3, window_bounds = array<i64: 128, 128>}, {pipeline_mode = #tpu.pipeline_mode<synchronous>, transform_indices = @transform_4, window_bounds = array<i64: 1, 128>}, {pipeline_mode = #tpu.pipeline_mode<synchronous>, transform_indices = @transform_5, window_bounds = array<i64: 128, 128>}, {pipeline_mode = #tpu.pipeline_mode<synchronous>, transform_indices = @transform_6, window_bounds = array<i64: 1, 128>}, {pipeline_mode = #tpu.pipeline_mode<synchronous>, transform_indices = @transform_7, window_bounds = array<i64: 128, 128>}, {pipeline_mode = #tpu.pipeline_mode<synchronous>, transform_indices = @transform_8, window_bounds = array<i64: 1, 128>}, {transform_indices = @transform_9, window_bounds = array<i64: 8, 128>}]} {
    %c0 = arith.constant 0 : index
    %c0_0 = arith.constant 0 : index
    %0 = vector.load %arg1[%c0, %c0_0] : memref<8x32xf32, #tpu.memory_space<vmem>>, vector<8x32xf32>
    %1 = arith.truncf %0 : vector<8x32xf32> to vector<8x32xbf16>
    %c0_1 = arith.constant 0 : index
    %c0_2 = arith.constant 0 : index
    %2 = vector.load %arg2[%c0_1, %c0_2] : memref<32x128xbf16, #tpu.memory_space<vmem>>, vector<32x128xbf16>
    %cst = arith.constant dense<0.000000e+00> : vector<8x128xf32>
    %3 = tpu.matmul %1, %2, %cst {dimension_numbers = #tpu.dot_dimension_numbers<[1], [0], [0], [1], [0, 0, 1, 1], [], []>} : vector<8x32xbf16>, vector<32x128xbf16>, vector<8x128xf32> -> vector<8x128xf32>
    %c0_3 = arith.constant 0 : index
    %c0_4 = arith.constant 0 : index
    %4 = vector.load %arg3[%c0_3, %c0_4] : memref<1x128xf32, #tpu.memory_space<vmem>>, vector<1x128xf32>
    %5 = vector.broadcast %4 : vector<1x128xf32> to vector<8x128xf32>
    %6 = arith.addf %3, %5 : vector<8x128xf32>
    %cst_5 = arith.constant 0.000000e+00 : f32
    %7 = vector.broadcast %cst_5 : f32 to vector<8x128xf32>
    %8 = arith.maximumf %6, %7 : vector<8x128xf32>
    %9 = arith.truncf %8 : vector<8x128xf32> to vector<8x128xbf16>
    %c0_6 = arith.constant 0 : index
    %c0_7 = arith.constant 0 : index
    %10 = vector.load %arg4[%c0_6, %c0_7] : memref<128x128xbf16, #tpu.memory_space<vmem>>, vector<128x128xbf16>
    %cst_8 = arith.constant dense<0.000000e+00> : vector<8x128xf32>
    %11 = tpu.matmul %9, %10, %cst_8 {dimension_numbers = #tpu.dot_dimension_numbers<[1], [0], [0], [1], [0, 0, 1, 1], [], []>} : vector<8x128xbf16>, vector<128x128xbf16>, vector<8x128xf32> -> vector<8x128xf32>
    %c0_9 = arith.constant 0 : index
    %c0_10 = arith.constant 0 : index
    %12 = vector.load %arg5[%c0_9, %c0_10] : memref<1x128xf32, #tpu.memory_space<vmem>>, vector<1x128xf32>
    %13 = vector.broadcast %12 : vector<1x128xf32> to vector<8x128xf32>
    %14 = arith.addf %11, %13 : vector<8x128xf32>
    %cst_11 = arith.constant 0.000000e+00 : f32
    %15 = vector.broadcast %cst_11 : f32 to vector<8x128xf32>
    %16 = arith.maximumf %14, %15 : vector<8x128xf32>
    %17 = arith.truncf %16 : vector<8x128xf32> to vector<8x128xbf16>
    %c0_12 = arith.constant 0 : index
    %c0_13 = arith.constant 0 : index
    %18 = vector.load %arg6[%c0_12, %c0_13] : memref<128x128xbf16, #tpu.memory_space<vmem>>, vector<128x128xbf16>
    %cst_14 = arith.constant dense<0.000000e+00> : vector<8x128xf32>
    %19 = tpu.matmul %17, %18, %cst_14 {dimension_numbers = #tpu.dot_dimension_numbers<[1], [0], [0], [1], [0, 0, 1, 1], [], []>} : vector<8x128xbf16>, vector<128x128xbf16>, vector<8x128xf32> -> vector<8x128xf32>
    %c0_15 = arith.constant 0 : index
    %c0_16 = arith.constant 0 : index
    %20 = vector.load %arg7[%c0_15, %c0_16] : memref<1x128xf32, #tpu.memory_space<vmem>>, vector<1x128xf32>
    %21 = vector.broadcast %20 : vector<1x128xf32> to vector<8x128xf32>
    %22 = arith.addf %19, %21 : vector<8x128xf32>
    %cst_17 = arith.constant 0.000000e+00 : f32
    %23 = vector.broadcast %cst_17 : f32 to vector<8x128xf32>
    %24 = arith.maximumf %22, %23 : vector<8x128xf32>
    %25 = arith.truncf %24 : vector<8x128xf32> to vector<8x128xbf16>
    %c0_18 = arith.constant 0 : index
    %c0_19 = arith.constant 0 : index
    %26 = vector.load %arg8[%c0_18, %c0_19] : memref<128x128xbf16, #tpu.memory_space<vmem>>, vector<128x128xbf16>
    %cst_20 = arith.constant dense<0.000000e+00> : vector<8x128xf32>
    %27 = tpu.matmul %25, %26, %cst_20 {dimension_numbers = #tpu.dot_dimension_numbers<[1], [0], [0], [1], [0, 0, 1, 1], [], []>} : vector<8x128xbf16>, vector<128x128xbf16>, vector<8x128xf32> -> vector<8x128xf32>
    %c0_21 = arith.constant 0 : index
    %c0_22 = arith.constant 0 : index
    %28 = vector.load %arg9[%c0_21, %c0_22] : memref<1x128xf32, #tpu.memory_space<vmem>>, vector<1x128xf32>
    %29 = vector.broadcast %28 : vector<1x128xf32> to vector<8x128xf32>
    %30 = arith.addf %27, %29 : vector<8x128xf32>
    %cst_23 = arith.constant -3.000000e+01 : f32
    %cst_24 = arith.constant 3.000000e+01 : f32
    %31 = vector.broadcast %cst_23 : f32 to vector<8x128xf32>
    %32 = arith.maximumf %31, %30 : vector<8x128xf32>
    %33 = vector.broadcast %cst_24 : f32 to vector<8x128xf32>
    %34 = arith.minimumf %33, %32 : vector<8x128xf32>
    %cst_25 = arith.constant 0.000000e+00 : f32
    %35 = vector.broadcast %cst_25 : f32 to vector<8x128xf32>
    %36 = arith.subf %35, %34 : vector<8x128xf32>
    %37 = math.exp %36 : vector<8x128xf32>
    %cst_26 = arith.constant 1.000000e+00 : f32
    %38 = vector.broadcast %cst_26 : f32 to vector<8x128xf32>
    %39 = arith.addf %38, %37 : vector<8x128xf32>
    %40 = tpu.reciprocal %39 {approx = true} : vector<8x128xf32> -> vector<8x128xf32>
    %41 = arith.truncf %40 : vector<8x128xf32> to vector<8x128xbf16>
    %c0_27 = arith.constant 0 : index
    %c0_28 = arith.constant 0 : index
    %42 = vector.load %arg10[%c0_27, %c0_28] : memref<8x128xbf16, #tpu.memory_space<vmem>>, vector<8x128xbf16>
    tpu.vector_store %arg10[%c0_27, %c0_28], %41 {strides = array<i32>} : memref<8x128xbf16, #tpu.memory_space<vmem>>, vector<8x128xbf16>,
    return
  }
  func.func @transform_0(%arg0: i32) -> (i32, i32) {
    %c0_i32 = arith.constant 0 : i32
    %c0_i32_0 = arith.constant 0 : i32
    return %arg0, %c0_i32 : i32, i32
  }
  func.func @transform_1(%arg0: i32) -> (i32, i32) {
    %c0_i32 = arith.constant 0 : i32
    %c0_i32_0 = arith.constant 0 : i32
    %c0_i32_1 = arith.constant 0 : i32
    return %c0_i32, %c0_i32_0 : i32, i32
  }
  func.func @transform_2(%arg0: i32) -> (i32, i32) {
    %c0_i32 = arith.constant 0 : i32
    %c0_i32_0 = arith.constant 0 : i32
    %c0_i32_1 = arith.constant 0 : i32
    return %c0_i32, %c0_i32_0 : i32, i32
  }
  func.func @transform_3(%arg0: i32) -> (i32, i32) {
    %c0_i32 = arith.constant 0 : i32
    %c0_i32_0 = arith.constant 0 : i32
    %c0_i32_1 = arith.constant 0 : i32
    return %c0_i32, %c0_i32_0 : i32, i32
  }
  func.func @transform_4(%arg0: i32) -> (i32, i32) {
    %c0_i32 = arith.constant 0 : i32
    %c0_i32_0 = arith.constant 0 : i32
    %c0_i32_1 = arith.constant 0 : i32
    return %c0_i32, %c0_i32_0 : i32, i32
  }
  func.func @transform_5(%arg0: i32) -> (i32, i32) {
    %c0_i32 = arith.constant 0 : i32
    %c0_i32_0 = arith.constant 0 : i32
    %c0_i32_1 = arith.constant 0 : i32
    return %c0_i32, %c0_i32_0 : i32, i32
  }
  func.func @transform_6(%arg0: i32) -> (i32, i32) {
    %c0_i32 = arith.constant 0 : i32
    %c0_i32_0 = arith.constant 0 : i32
    %c0_i32_1 = arith.constant 0 : i32
    return %c0_i32, %c0_i32_0 : i32, i32
  }
  func.func @transform_7(%arg0: i32) -> (i32, i32) {
    %c0_i32 = arith.constant 0 : i32
    %c0_i32_0 = arith.constant 0 : i32
    %c0_i32_1 = arith.constant 0 : i32
    return %c0_i32, %c0_i32_0 : i32, i32
  }
  func.func @transform_8(%arg0: i32) -> (i32, i32) {
    %c0_i32 = arith.constant 0 : i32
    %c0_i32_0 = arith.constant 0 : i32
    %c0_i32_1 = arith.constant 0 : i32
    return %c0_i32, %c0_i32_0 : i32, i32
  }
  func.func @transform_9(%arg0: i32) -> (i32, i32) {
    %c0_i32 = arith.constant 0 : i32
    %c0_i32_0 = arith.constant 0 : i32
    return %arg0, %c0_i32 : i32, i32
  }
}

</mosaic_0001>

<llo_original>
// kernel: tpu_custom_call.1
$region0: #{tpu_custom_call.1}
  #allocation0 [shape = 'u32[]', space=smem, size = 0x4, offset = 0x4, fixed_abs, tag = 'smem constant byte address 0x4 - core index']
  #allocation1 [shape = 'u32[144,128]{1,0:T(1,128)}', space=vmem, size = 0x12000, scoped, tag = 'internal scratch']
  %s0 = inlined_call_operand.hbm [shape: f32[8,32], index: 0, kind: input, shape index: {}]
  %s1 = inlined_call_operand.hbm [shape: bf16[32,128], index: 1, kind: input, shape index: {}]
  %s2 = inlined_call_operand.vmem [shape: f32[1,128], index: 2, kind: input, shape index: {}]
  %s3 = inlined_call_operand.hbm [shape: bf16[128,128], index: 3, kind: input, shape index: {}]
  %s4 = inlined_call_operand.vmem [shape: f32[1,128], index: 4, kind: input, shape index: {}]
  %s5 = inlined_call_operand.hbm [shape: bf16[128,128], index: 5, kind: input, shape index: {}]
  %s6 = inlined_call_operand.vmem [shape: f32[1,128], index: 6, kind: input, shape index: {}]
  %s7 = inlined_call_operand.hbm [shape: bf16[128,128], index: 7, kind: input, shape index: {}]
  %s8 = inlined_call_operand.vmem [shape: f32[1,128], index: 8, kind: input, shape index: {}]
  %s9 = inlined_call_operand.hbm [shape: bf16[8,128], index: 9, kind: output, shape index: {}]
  %s10 = sld [smem:[#allocation0]]
  $region66: #{tpu_custom_call.1} parent=0
    _
  %s12 = ssub.s32 1, %s10
  %s13 = scalar_select 0, %s12, %s10
  $region1: #{tpu_custom_call.1} parent=0
    #allocation2 [shape = 'u8[4096]{0}', space=vmem, size = 0x1000, scoped, tag = 'input window, operand 0, single buffered']
    #allocation3 [shape = 's32[1]{0}', space=sflag, size = 0x4, scoped, tag = 'scoped memory for tpu_custom_call.1']
    #allocation4 [shape = 's32[1]{0}', space=sflag, size = 0x4, scoped, tag = 'scoped memory for tpu_custom_call.1']
    #allocation5 [shape = 'u8[8192]{0}', space=vmem, size = 0x2000, scoped, tag = 'input window, operand 1, single buffered']
    #allocation6 [shape = 's32[1]{0}', space=sflag, size = 0x4, scoped, tag = 'scoped memory for tpu_custom_call.1']
    #allocation7 [shape = 'u8[32768]{0}', space=vmem, size = 0x8000, scoped, tag = 'input window, operand 3, single buffered']
    #allocation8 [shape = 'u8[32768]{0}', space=vmem, size = 0x8000, scoped, tag = 'input window, operand 5, single buffered']
    #allocation9 [shape = 's32[1]{0}', space=sflag, size = 0x4, scoped, tag = 'scoped memory for tpu_custom_call.1']
    #allocation10 [shape = 'u8[32768]{0}', space=vmem, size = 0x8000, scoped, tag = 'input window, operand 7, single buffered']
    #allocation11 [shape = 'u8[2048]{0}', space=vmem, size = 0x800, scoped, tag = 'output window, operand 0, single buffered']
    %14 = vsyncpa [#allocation3], 0
    %15 = vsyncpa [#allocation6], 0
    %16 = vsyncpa [#allocation9], 0
    %17 = vsyncpa [#allocation4], 0
    // Predicated region
    $region2: #{tpu_custom_call.1} parent=1 // pred_check
      _
    $region3: #{tpu_custom_call.1} parent=1 // pred_check_branch
      %19 = sbr.rel (0) target = $region5
    $region4: #{tpu_custom_call.1} parent=1 // pred_region
      %s21 = ssub.s32 128, 128
      %22 = vsyncadd [#allocation3], %s21
      %s24 = sshll.u32 [#allocation2], 4
      %s25 = int_to_ptr.vmem [resolvable:$true] %s24
      %27 = dma.hbm_to_vmem [thread:$0]  %s0, 128, %s25, [#allocation3]
    $region5: #{tpu_custom_call.1} parent=1 // pred_fallthru
      _
    // Predicated region
    $region6: #{tpu_custom_call.1} parent=1 // pred_check
      _
    $region7: #{tpu_custom_call.1} parent=1 // pred_check_branch
      %29 = sbr.rel (0) target = $region9
    $region8: #{tpu_custom_call.1} parent=1 // pred_region
      %s31 = ssub.s32 256, 256
      %32 = vsyncadd [#allocation6], %s31
      %s33 = sshll.u32 [#allocation5], 4
      %s34 = int_to_ptr.vmem [resolvable:$true] %s33
      %39 = dma.hbm_to_vmem [thread:$0]  %s1, 256, %s34, [#allocation6], 64, 64, 4
    $region9: #{tpu_custom_call.1} parent=1 // pred_fallthru
      _
    // Predicated region
    $region10: #{tpu_custom_call.1} parent=1 // pred_check
      _
    $region11: #{tpu_custom_call.1} parent=1 // pred_check_branch
      %41 = sbr.rel (0) target = $region13
    $region12: #{tpu_custom_call.1} parent=1 // pred_region
      _
    $region13: #{tpu_custom_call.1} parent=1 // pred_fallthru
      _
    // Predicated region
    $region14: #{tpu_custom_call.1} parent=1 // pred_check
      _
    $region15: #{tpu_custom_call.1} parent=1 // pred_check_branch
      %43 = sbr.rel (0) target = $region17
    $region16: #{tpu_custom_call.1} parent=1 // pred_region
      %s45 = ssub.s32 1024, 1024
      %46 = vsyncadd [#allocation6], %s45
      %s47 = sshll.u32 [#allocation7], 4
      %s48 = int_to_ptr.vmem [resolvable:$true] %s47
      %53 = dma.hbm_to_vmem [thread:$0]  %s3, 1024, %s48, [#allocation6], 64, 64, 4
    $region17: #{tpu_custom_call.1} parent=1 // pred_fallthru
      _
    // Predicated region
    $region18: #{tpu_custom_call.1} parent=1 // pred_check
      _
    $region19: #{tpu_custom_call.1} parent=1 // pred_check_branch
      %55 = sbr.rel (0) target = $region21
    $region20: #{tpu_custom_call.1} parent=1 // pred_region
      _
    $region21: #{tpu_custom_call.1} parent=1 // pred_fallthru
      _
    // Predicated region
    $region22: #{tpu_custom_call.1} parent=1 // pred_check
      _
    $region23: #{tpu_custom_call.1} parent=1 // pred_check_branch
      %57 = sbr.rel (0) target = $region25
    $region24: #{tpu_custom_call.1} parent=1 // pred_region
      %s59 = ssub.s32 1024, 1024
      %60 = vsyncadd [#allocation9], %s59
      %s61 = sshll.u32 [#allocation8], 4
      %s62 = int_to_ptr.vmem [resolvable:$true] %s61
      %67 = dma.hbm_to_vmem [thread:$0]  %s5, 1024, %s62, [#allocation9], 64, 64, 4
    $region25: #{tpu_custom_call.1} parent=1 // pred_fallthru
      _
    // Predicated region
    $region26: #{tpu_custom_call.1} parent=1 // pred_check
      _
    $region27: #{tpu_custom_call.1} parent=1 // pred_check_branch
      %69 = sbr.rel (0) target = $region29
    $region28: #{tpu_custom_call.1} parent=1 // pred_region
      _
    $region29: #{tpu_custom_call.1} parent=1 // pred_fallthru
      _
    // Predicated region
    $region30: #{tpu_custom_call.1} parent=1 // pred_check
      _
    $region31: #{tpu_custom_call.1} parent=1 // pred_check_branch
      %71 = sbr.rel (0) target = $region33
    $region32: #{tpu_custom_call.1} parent=1 // pred_region
      %s73 = ssub.s32 1024, 1024
      %74 = vsyncadd [#allocation9], %s73
      %s75 = sshll.u32 [#allocation10], 4
      %s76 = int_to_ptr.vmem [resolvable:$true] %s75
      %81 = dma.hbm_to_vmem [thread:$0]  %s7, 1024, %s76, [#allocation9], 64, 64, 4
    $region33: #{tpu_custom_call.1} parent=1 // pred_fallthru
      _
    // Predicated region
    $region34: #{tpu_custom_call.1} parent=1 // pred_check
      _
    $region35: #{tpu_custom_call.1} parent=1 // pred_check_branch
      %83 = sbr.rel (0) target = $region37
    $region36: #{tpu_custom_call.1} parent=1 // pred_region
      _
    $region37: #{tpu_custom_call.1} parent=1 // pred_fallthru
      _
    // Predicated region
    $region38: #{tpu_custom_call.1} parent=1 // pred_check
      _
    $region39: #{tpu_custom_call.1} parent=1 // pred_check_branch
      %85 = sbr.rel (0) target = $region41
    $region40: #{tpu_custom_call.1} parent=1 // pred_region
      %86 = dma.done [#allocation3], 128
    $region41: #{tpu_custom_call.1} parent=1 // pred_fallthru
      _
    // Predicated region
    $region42: #{tpu_custom_call.1} parent=1 // pred_check
      _
    $region43: #{tpu_custom_call.1} parent=1 // pred_check_branch
      %88 = sbr.rel (0) target = $region45
    $region44: #{tpu_custom_call.1} parent=1 // pred_region
      %89 = dma.done [#allocation6], 256
    $region45: #{tpu_custom_call.1} parent=1 // pred_fallthru
      _
    // Predicated region
    $region46: #{tpu_custom_call.1} parent=1 // pred_check
      _
    $region47: #{tpu_custom_call.1} parent=1 // pred_check_branch
      %91 = sbr.rel (0) target = $region49
    $region48: #{tpu_custom_call.1} parent=1 // pred_region
      %92 = dma.done [#allocation6], 1024
    $region49: #{tpu_custom_call.1} parent=1 // pred_fallthru
      _
    // Predicated region
    $region50: #{tpu_custom_call.1} parent=1 // pred_check
      _
    $region51: #{tpu_custom_call.1} parent=1 // pred_check_branch
      %94 = sbr.rel (0) target = $region53
    $region52: #{tpu_custom_call.1} parent=1 // pred_region
      %95 = dma.done [#allocation9], 1024
    $region53: #{tpu_custom_call.1} parent=1 // pred_fallthru
      _
    // Predicated region
    $region54: #{tpu_custom_call.1} parent=1 // pred_check
      _
    $region55: #{tpu_custom_call.1} parent=1 // pred_check_branch
      %97 = sbr.rel (0) target = $region57
    $region56: #{tpu_custom_call.1} parent=1 // pred_region
      %98 = dma.done [#allocation9], 1024
    $region57: #{tpu_custom_call.1} parent=1 // pred_fallthru
      _
    %v100 = vld [vmem:[#allocation2] sm:$0xff]
    %v101 = vpack.c.bf16 %v100, %v100
    %v102 = vld [vmem:[#allocation5] sm:$0xf]
    %v103 = vld [vmem:[#allocation5 + $0x4] sm:$0xf]
    %v104 = vld [vmem:[#allocation5 + $0x8] sm:$0xf]
    %v105 = vld [vmem:[#allocation5 + $0xc] sm:$0xf]
    %v106 = vld [vmem:[%s2] sm:$0x1]
    %v108 = vlaneseq
    %v109 = vshrl.u32 %v108, 7
    %v110 = vsub.s32 0, %v109
    %v111 = vrot.slane %v106, %v110
    %v117 = vunpack.c.l.b16 %v102
    %v118 = vunpack.c.l.b16 %v103
    %v119 = vunpack.c.l.b16 %v104
    %v120 = vunpack.c.l.b16 %v105
    %v121 = vpack.c.b16 %v118, %v117
    %v122 = vpack.c.b16 %v120, %v119
    %vm125 = vcmask 261120
    %v127 = vsel %vm125, %v101, 0
    %129 = vmatprep.subr.bf16.mxu0 0
    %130 = vmatpush1.bf16.msra.mxu0 0
    %131 = vmatprep.subr.bf16.mxu0 0
    %132 = vmatpush1.bf16.msra.mxu0 0
    %133 = vmatprep.subr.bf16.mxu0 0
    %134 = vmatpush1.bf16.msra.mxu0 0
    %135 = vmatprep.subr.bf16.mxu0 0
    %136 = vmatpush1.bf16.msra.mxu0 0
    %137 = vmatprep.subr.bf16.mxu0 0
    %138 = vmatpush1.bf16.msra.mxu0 0
    %139 = vmatprep.subr.bf16.mxu0 0
    %140 = vmatpush1.bf16.msra.mxu0 0
    %141 = vmatprep.subr.bf16.mxu0 0
    %142 = vmatpush1.bf16.msra.mxu0 %v122
    %143 = vmatprep.subr.bf16.mxu0 0
    %144 = vmatpush1.bf16.msra.mxu0 %v121
    %145 = vmatprep.subr.bf16.mxu0 0
    %146 = vmatpush2.bf16.msra.mxu0 0
    %147 = vmatprep.subr.bf16.mxu0 0
    %148 = vmatpush2.bf16.msra.mxu0 0
    %149 = vmatprep.subr.bf16.mxu0 0
    %150 = vmatpush2.bf16.msra.mxu0 0
    %151 = vmatprep.subr.bf16.mxu0 0
    %152 = vmatpush2.bf16.msra.mxu0 0
    %153 = vmatprep.subr.bf16.mxu0 0
    %154 = vmatpush2.bf16.msra.mxu0 0
    %155 = vmatprep.subr.bf16.mxu0 0
    %156 = vmatpush2.bf16.msra.mxu0 0
    %157 = vmatprep.subr.bf16.mxu0 0
    %158 = vmatpush2.bf16.msra.mxu0 0
    %159 = vmatprep.subr.bf16.mxu0 0
    %160 = vmatpush2.bf16.msra.mxu0 0
    %161 = vmatprep.mubr.bf16.mxu0 0
    %162 = vmatmul.mubr.bf16.gmra.mxu0 %v127
    %v163 = vpop.f32.mrf.mxu0
    %v164 = vadd.f32 %v111, %v163
    %v165 = vpop.f32.mrf.mxu0
    %v166 = vpop.f32.mrf.mxu0
    %v167 = vpop.f32.mrf.mxu0
    %168 = vdwg.mxu0
    %v169 = vmax.f32 %v164, 0.0
    %v170 = vpack.c.bf16 %v169, %v169
    %v171 = vld [vmem:[#allocation7] sm:$0xf]
    %v172 = vld [vmem:[#allocation7 + $0x4] sm:$0xf]
    %v173 = vld [vmem:[#allocation7 + $0x8] sm:$0xf]
    %v174 = vld [vmem:[#allocation7 + $0xc] sm:$0xf]
    %v175 = vld [vmem:[#allocation7 + $0x10] sm:$0xf]
    %v176 = vld [vmem:[#allocation7 + $0x14] sm:$0xf]
    %v177 = vld [vmem:[#allocation7 + $0x18] sm:$0xf]
    %v178 = vld [vmem:[#allocation7 + $0x1c] sm:$0xf]
    %v179 = vld [vmem:[#allocation7 + $0x20] sm:$0xf]
    %v180 = vld [vmem:[#allocation7 + $0x24] sm:$0xf]
    %v181 = vld [vmem:[#allocation7 + $0x28] sm:$0xf]
    %v182 = vld [vmem:[#allocation7 + $0x2c] sm:$0xf]
    %v183 = vld [vmem:[#allocation7 + $0x30] sm:$0xf]
    %v184 = vld [vmem:[#allocation7 + $0x34] sm:$0xf]
    %v185 = vld [vmem:[#allocation7 + $0x38] sm:$0xf]
    %v186 = vld [vmem:[#allocation7 + $0x3c] sm:$0xf]
    %v187 = vld [vmem:[%s4] sm:$0x1]
    %v189 = vlaneseq
    %v190 = vshrl.u32 %v189, 7
    %v191 = vsub.s32 0, %v190
    %v192 = vrot.slane %v187, %v191
    %v210 = vunpack.c.l.b16 %v171
    %v211 = vunpack.c.l.b16 %v172
    %v212 = vunpack.c.l.b16 %v173
    %v213 = vunpack.c.l.b16 %v174
    %v214 = vunpack.c.l.b16 %v175
    %v215 = vunpack.c.l.b16 %v176
    %v216 = vunpack.c.l.b16 %v177
    %v217 = vunpack.c.l.b16 %v178
    %v218 = vunpack.c.l.b16 %v179
    %v219 = vunpack.c.l.b16 %v180
    %v220 = vunpack.c.l.b16 %v181
    %v221 = vunpack.c.l.b16 %v182
    %v222 = vunpack.c.l.b16 %v183
    %v223 = vunpack.c.l.b16 %v184
    %v224 = vunpack.c.l.b16 %v185
    %v225 = vunpack.c.l.b16 %v186
    %v226 = vpack.c.b16 %v211, %v210
    %v227 = vpack.c.b16 %v213, %v212
    %v228 = vpack.c.b16 %v215, %v214
    %v229 = vpack.c.b16 %v217, %v216
    %v230 = vpack.c.b16 %v219, %v218
    %v231 = vpack.c.b16 %v221, %v220
    %v232 = vpack.c.b16 %v223, %v222
    %v233 = vpack.c.b16 %v225, %v224
    %242 = vmatprep.subr.bf16.mxu0 0
    %243 = vmatpush1.bf16.msra.mxu0 %v233
    %244 = vmatprep.subr.bf16.mxu0 0
    %245 = vmatpush1.bf16.msra.mxu0 %v232
    %246 = vmatprep.subr.bf16.mxu0 0
    %247 = vmatpush1.bf16.msra.mxu0 %v231
    %248 = vmatprep.subr.bf16.mxu0 0
    %249 = vmatpush1.bf16.msra.mxu0 %v230
    %250 = vmatprep.subr.bf16.mxu0 0
    %251 = vmatpush1.bf16.msra.mxu0 %v229
    %252 = vmatprep.subr.bf16.mxu0 0
    %253 = vmatpush1.bf16.msra.mxu0 %v228
    %254 = vmatprep.subr.bf16.mxu0 0
    %255 = vmatpush1.bf16.msra.mxu0 %v227
    %256 = vmatprep.subr.bf16.mxu0 0
    %257 = vmatpush1.bf16.msra.mxu0 %v226
    %258 = vmatprep.subr.bf16.mxu0 0
    %259 = vmatpush2.bf16.msra.mxu0 0
    %260 = vmatprep.subr.bf16.mxu0 0
    %261 = vmatpush2.bf16.msra.mxu0 0
    %262 = vmatprep.subr.bf16.mxu0 0
    %263 = vmatpush2.bf16.msra.mxu0 0
    %264 = vmatprep.subr.bf16.mxu0 0
    %265 = vmatpush2.bf16.msra.mxu0 0
    %266 = vmatprep.subr.bf16.mxu0 0
    %267 = vmatpush2.bf16.msra.mxu0 0
    %268 = vmatprep.subr.bf16.mxu0 0
    %269 = vmatpush2.bf16.msra.mxu0 0
    %270 = vmatprep.subr.bf16.mxu0 0
    %271 = vmatpush2.bf16.msra.mxu0 0
    %272 = vmatprep.subr.bf16.mxu0 0
    %273 = vmatpush2.bf16.msra.mxu0 0
    %274 = vmatprep.mubr.bf16.mxu0 0
    %275 = vmatmul.mubr.bf16.gmra.mxu0 %v170
    %v276 = vpop.f32.mrf.mxu0
    %v277 = vadd.f32 %v192, %v276
    %v278 = vpop.f32.mrf.mxu0
    %v279 = vpop.f32.mrf.mxu0
    %v280 = vpop.f32.mrf.mxu0
    %281 = vdwg.mxu0
    %v282 = vmax.f32 %v277, 0.0
    %v283 = vpack.c.bf16 %v282, %v282
    %v284 = vld [vmem:[#allocation8] sm:$0xf]
    %v285 = vld [vmem:[#allocation8 + $0x4] sm:$0xf]
    %v286 = vld [vmem:[#allocation8 + $0x8] sm:$0xf]
    %v287 = vld [vmem:[#allocation8 + $0xc] sm:$0xf]
    %v288 = vld [vmem:[#allocation8 + $0x10] sm:$0xf]
    %v289 = vld [vmem:[#allocation8 + $0x14] sm:$0xf]
    %v290 = vld [vmem:[#allocation8 + $0x18] sm:$0xf]
    %v291 = vld [vmem:[#allocation8 + $0x1c] sm:$0xf]
    %v292 = vld [vmem:[#allocation8 + $0x20] sm:$0xf]
    %v293 = vld [vmem:[#allocation8 + $0x24] sm:$0xf]
    %v294 = vld [vmem:[#allocation8 + $0x28] sm:$0xf]
    %v295 = vld [vmem:[#allocation8 + $0x2c] sm:$0xf]
    %v296 = vld [vmem:[#allocation8 + $0x30] sm:$0xf]
    %v297 = vld [vmem:[#allocation8 + $0x34] sm:$0xf]
    %v298 = vld [vmem:[#allocation8 + $0x38] sm:$0xf]
    %v299 = vld [vmem:[#allocation8 + $0x3c] sm:$0xf]
    %v300 = vld [vmem:[%s6] sm:$0x1]
    %v302 = vlaneseq
    %v303 = vshrl.u32 %v302, 7
    %v304 = vsub.s32 0, %v303
    %v305 = vrot.slane %v300, %v304
    %v323 = vunpack.c.l.b16 %v284
    %v324 = vunpack.c.l.b16 %v285
    %v325 = vunpack.c.l.b16 %v286
    %v326 = vunpack.c.l.b16 %v287
    %v327 = vunpack.c.l.b16 %v288
    %v328 = vunpack.c.l.b16 %v289
    %v329 = vunpack.c.l.b16 %v290
    %v330 = vunpack.c.l.b16 %v291
    %v331 = vunpack.c.l.b16 %v292
    %v332 = vunpack.c.l.b16 %v293
    %v333 = vunpack.c.l.b16 %v294
    %v334 = vunpack.c.l.b16 %v295
    %v335 = vunpack.c.l.b16 %v296
    %v336 = vunpack.c.l.b16 %v297
    %v337 = vunpack.c.l.b16 %v298
    %v338 = vunpack.c.l.b16 %v299
    %v339 = vpack.c.b16 %v324, %v323
    %v340 = vpack.c.b16 %v326, %v325
    %v341 = vpack.c.b16 %v328, %v327
    %v342 = vpack.c.b16 %v330, %v329
    %v343 = vpack.c.b16 %v332, %v331
    %v344 = vpack.c.b16 %v334, %v333
    %v345 = vpack.c.b16 %v336, %v335
    %v346 = vpack.c.b16 %v338, %v337
    %355 = vmatprep.subr.bf16.mxu0 0
    %356 = vmatpush1.bf16.msra.mxu0 %v346
    %357 = vmatprep.subr.bf16.mxu0 0
    %358 = vmatpush1.bf16.msra.mxu0 %v345
    %359 = vmatprep.subr.bf16.mxu0 0
    %360 = vmatpush1.bf16.msra.mxu0 %v344
    %361 = vmatprep.subr.bf16.mxu0 0
    %362 = vmatpush1.bf16.msra.mxu0 %v343
    %363 = vmatprep.subr.bf16.mxu0 0
    %364 = vmatpush1.bf16.msra.mxu0 %v342
    %365 = vmatprep.subr.bf16.mxu0 0
    %366 = vmatpush1.bf16.msra.mxu0 %v341
    %367 = vmatprep.subr.bf16.mxu0 0
    %368 = vmatpush1.bf16.msra.mxu0 %v340
    %369 = vmatprep.subr.bf16.mxu0 0
    %370 = vmatpush1.bf16.msra.mxu0 %v339
    %371 = vmatprep.subr.bf16.mxu0 0
    %372 = vmatpush2.bf16.msra.mxu0 0
    %373 = vmatprep.subr.bf16.mxu0 0
    %374 = vmatpush2.bf16.msra.mxu0 0
    %375 = vmatprep.subr.bf16.mxu0 0
    %376 = vmatpush2.bf16.msra.mxu0 0
    %377 = vmatprep.subr.bf16.mxu0 0
    %378 = vmatpush2.bf16.msra.mxu0 0
    %379 = vmatprep.subr.bf16.mxu0 0
    %380 = vmatpush2.bf16.msra.mxu0 0
    %381 = vmatprep.subr.bf16.mxu0 0
    %382 = vmatpush2.bf16.msra.mxu0 0
    %383 = vmatprep.subr.bf16.mxu0 0
    %384 = vmatpush2.bf16.msra.mxu0 0
    %385 = vmatprep.subr.bf16.mxu0 0
    %386 = vmatpush2.bf16.msra.mxu0 0
    %387 = vmatprep.mubr.bf16.mxu0 0
    %388 = vmatmul.mubr.bf16.gmra.mxu0 %v283
    %v389 = vpop.f32.mrf.mxu0
    %v390 = vadd.f32 %v305, %v389
    %v391 = vpop.f32.mrf.mxu0
    %v392 = vpop.f32.mrf.mxu0
    %v393 = vpop.f32.mrf.mxu0
    %394 = vdwg.mxu0
    %v395 = vmax.f32 %v390, 0.0
    %v396 = vpack.c.bf16 %v395, %v395
    %v397 = vld [vmem:[#allocation10] sm:$0xf]
    %v398 = vld [vmem:[#allocation10 + $0x4] sm:$0xf]
    %v399 = vld [vmem:[#allocation10 + $0x8] sm:$0xf]
    %v400 = vld [vmem:[#allocation10 + $0xc] sm:$0xf]
    %v401 = vld [vmem:[#allocation10 + $0x10] sm:$0xf]
    %v402 = vld [vmem:[#allocation10 + $0x14] sm:$0xf]
    %v403 = vld [vmem:[#allocation10 + $0x18] sm:$0xf]
    %v404 = vld [vmem:[#allocation10 + $0x1c] sm:$0xf]
    %v405 = vld [vmem:[#allocation10 + $0x20] sm:$0xf]
    %v406 = vld [vmem:[#allocation10 + $0x24] sm:$0xf]
    %v407 = vld [vmem:[#allocation10 + $0x28] sm:$0xf]
    %v408 = vld [vmem:[#allocation10 + $0x2c] sm:$0xf]
    %v409 = vld [vmem:[#allocation10 + $0x30] sm:$0xf]
    %v410 = vld [vmem:[#allocation10 + $0x34] sm:$0xf]
    %v411 = vld [vmem:[#allocation10 + $0x38] sm:$0xf]
    %v412 = vld [vmem:[#allocation10 + $0x3c] sm:$0xf]
    %v413 = vld [vmem:[%s8] sm:$0x1]
    %v415 = vlaneseq
    %v416 = vshrl.u32 %v415, 7
    %v417 = vsub.s32 0, %v416
    %v418 = vrot.slane %v413, %v417
    %v436 = vunpack.c.l.b16 %v397
    %v437 = vunpack.c.l.b16 %v398
    %v438 = vunpack.c.l.b16 %v399
    %v439 = vunpack.c.l.b16 %v400
    %v440 = vunpack.c.l.b16 %v401
    %v441 = vunpack.c.l.b16 %v402
    %v442 = vunpack.c.l.b16 %v403
    %v443 = vunpack.c.l.b16 %v404
    %v444 = vunpack.c.l.b16 %v405
    %v445 = vunpack.c.l.b16 %v406
    %v446 = vunpack.c.l.b16 %v407
    %v447 = vunpack.c.l.b16 %v408
    %v448 = vunpack.c.l.b16 %v409
    %v449 = vunpack.c.l.b16 %v410
    %v450 = vunpack.c.l.b16 %v411
    %v451 = vunpack.c.l.b16 %v412
    %v452 = vpack.c.b16 %v437, %v436
    %v453 = vpack.c.b16 %v439, %v438
    %v454 = vpack.c.b16 %v441, %v440
    %v455 = vpack.c.b16 %v443, %v442
    %v456 = vpack.c.b16 %v445, %v444
    %v457 = vpack.c.b16 %v447, %v446
    %v458 = vpack.c.b16 %v449, %v448
    %v459 = vpack.c.b16 %v451, %v450
    %468 = vmatprep.subr.bf16.mxu0 0
    %469 = vmatpush1.bf16.msra.mxu0 %v459
    %470 = vmatprep.subr.bf16.mxu0 0
    %471 = vmatpush1.bf16.msra.mxu0 %v458
    %472 = vmatprep.subr.bf16.mxu0 0
    %473 = vmatpush1.bf16.msra.mxu0 %v457
    %474 = vmatprep.subr.bf16.mxu0 0
    %475 = vmatpush1.bf16.msra.mxu0 %v456
    %476 = vmatprep.subr.bf16.mxu0 0
    %477 = vmatpush1.bf16.msra.mxu0 %v455
    %478 = vmatprep.subr.bf16.mxu0 0
    %479 = vmatpush1.bf16.msra.mxu0 %v454
    %480 = vmatprep.subr.bf16.mxu0 0
    %481 = vmatpush1.bf16.msra.mxu0 %v453
    %482 = vmatprep.subr.bf16.mxu0 0
    %483 = vmatpush1.bf16.msra.mxu0 %v452
    %484 = vmatprep.subr.bf16.mxu0 0
    %485 = vmatpush2.bf16.msra.mxu0 0
    %486 = vmatprep.subr.bf16.mxu0 0
    %487 = vmatpush2.bf16.msra.mxu0 0
    %488 = vmatprep.subr.bf16.mxu0 0
    %489 = vmatpush2.bf16.msra.mxu0 0
    %490 = vmatprep.subr.bf16.mxu0 0
    %491 = vmatpush2.bf16.msra.mxu0 0
    %492 = vmatprep.subr.bf16.mxu0 0
    %493 = vmatpush2.bf16.msra.mxu0 0
    %494 = vmatprep.subr.bf16.mxu0 0
    %495 = vmatpush2.bf16.msra.mxu0 0
    %496 = vmatprep.subr.bf16.mxu0 0
    %497 = vmatpush2.bf16.msra.mxu0 0
    %498 = vmatprep.subr.bf16.mxu0 0
    %499 = vmatpush2.bf16.msra.mxu0 0
    %500 = vmatprep.mubr.bf16.mxu0 0
    %501 = vmatmul.mubr.bf16.gmra.mxu0 %v396
    %v502 = vpop.f32.mrf.mxu0
    %v503 = vadd.f32 %v418, %v502
    %v504 = vpop.f32.mrf.mxu0
    %v505 = vpop.f32.mrf.mxu0
    %v506 = vpop.f32.mrf.mxu0
    %507 = vdwg.mxu0
    %v508 = vmax.f32 %v503, -30.0
    %v509 = vmin.f32 %v508, 30.0
    %v510 = vsub.f32 0.0, %v509
    %v511 = vmul.f32 %v510, 1.442695
    %v512 = vpow.pop %v511
    %v513 = vadd.f32 %v512, 1.0
    %v514 = vrcp.pop %v513
    %v515 = vpack.c.bf16 %v514, %v514
    %516 = vst [vmem:[#allocation11] sm:$0xf] %v515
    // Predicated region
    $region58: #{tpu_custom_call.1} parent=1 // pred_check
      _
    $region59: #{tpu_custom_call.1} parent=1 // pred_check_branch
      %518 = sbr.rel (0) target = $region61
    $region60: #{tpu_custom_call.1} parent=1 // pred_region
      %s520 = ssub.s32 64, 64
      %521 = vsyncadd [#allocation4], %s520
      %s523 = sshll.u32 [#allocation11], 4
      %s524 = int_to_ptr.vmem [resolvable:$true] %s523
      %526 = dma.vmem_to_hbm [thread:$0]  %s524, 64, %s9, [#allocation4]
    $region61: #{tpu_custom_call.1} parent=1 // pred_fallthru
      _
    // Predicated region
    $region62: #{tpu_custom_call.1} parent=1 // pred_check
      _
    $region63: #{tpu_custom_call.1} parent=1 // pred_check_branch
      %528 = sbr.rel (0) target = $region65
    $region64: #{tpu_custom_call.1} parent=1 // pred_region
      %529 = dma.done [#allocation4], 64
    $region65: #{tpu_custom_call.1} parent=1 // pred_fallthru
      _
    %530 = vsyncpa [#allocation3], 1
    %531 = vsyncpa [#allocation6], 1
    %532 = vsyncpa [#allocation9], 1
    %533 = vsyncpa [#allocation4], 1

</llo_original>
